<compile_context>
chip_gen: v6e
topology: v6e:2x2x1
jax: 0.10.0
libtpu: 0.0.40
codegen_flags: <defaults>
</compile_context>

<pallas_src>
import jax
import jax.numpy as jnp
from jax.experimental import pallas as pl
from jax.experimental.pallas import tpu as pltpu


def _round_up(x, m):
    return (x + m - 1) // m * m


def _make_mlp_kernel(seg_rows, n_hidden, out_rows):
    """seg_rows[i] = row count of layer-i's weight block in the packed bf16 weight slab.
    Hidden layers are stored (in, out); the final layer is stored TRANSPOSED (out, in)."""
    offsets = []
    off = 0
    for r in seg_rows:
        offsets.append(off)
        off += r

    def kernel(x_ref, w_ref, bh_ref, blt_ref, out_ref):
        # Cast activations to bf16 in-kernel (avoids a separate XLA cast + HBM round trip).
        h = x_ref[...].astype(jnp.bfloat16)                         # (TM, sp)
        for li in range(n_hidden):                                  # statically unrolled
            r0, rn = offsets[li], seg_rows[li]
            w = w_ref[r0:r0 + rn, :]                                # static tile-aligned bf16
            # bf16 x bf16 -> fp32 MXU accumulate; bias add + ReLU stay fp32 on the VPU.
            h = jnp.dot(h, w, preferred_element_type=jnp.float32) + bh_ref[li:li + 1, :]
            h = jnp.maximum(h, 0.0).astype(jnp.bfloat16)
        # Final layer, emitted transposed: out^T[a, m] = sum_k WT[a, k] * h[m, k]
        # (A . B^T form, identical to q.k^T in attention -> MXU, no explicit transpose).
        r0, rn = offsets[n_hidden], seg_rows[n_hidden]
        wt = w_ref[r0:r0 + rn, :]                                   # (act_sub, lane) bf16
        ot = jax.lax.dot_general(wt, h, (((1,), (1,)), ((), ())),
                                 preferred_element_type=jnp.float32)   # (act_sub, TM)
        out_ref[...] = ot[:out_rows, :] + blt_ref[...]              # lane-dense narrow store

    return kernel


def pack_params(params, state_dim, hidden_layers, action_dim):
    """Pack per-layer weights/biases for the kernel.

    Returns (w_packed, b_hidden, b_lastT, meta):
      w_packed: bf16 slab, rows = [sp | lane*(n_hidden-1) | act_sub], cols = lane.
                Hidden layers stored (in, out); final layer stored transposed (out, in).
      b_hidden: fp32 (8-sublane padded, lane) slab of hidden-layer biases.
      b_lastT : fp32 (out_rows, 1) column with the final-layer bias.
    Zero padding keeps padded lanes exactly 0 through matmul + bias + ReLU.
    """
    hidden_layers = tuple(hidden_layers)
    assert len(hidden_layers) >= 1, "QNetwork kernel expects at least one hidden layer"
    n_hidden = len(hidden_layers)
    dims = (state_dim,) + hidden_layers + (action_dim,)

    lane = _round_up(max(hidden_layers), 128)      # keep N/K at 128; don't pad further
    sp = _round_up(state_dim, 16)                  # bf16 sublane tile = 16 rows
    act_sub = _round_up(action_dim, 16)            # bf16 row tile for transposed final weight
    out_rows = _round_up(action_dim, 8)            # fp32 sublane tile for transposed output
    seg_rows = (sp,) + (lane,) * (n_hidden - 1) + (act_sub,)

    w_blocks, bh_rows = [], []
    for li in range(n_hidden):
        w = jnp.asarray(params[2 * li], jnp.float32)                    # (in, out)
        b = jnp.asarray(params[2 * li + 1], jnp.float32).reshape(-1)
        in_d, out_d = w.shape
        wp = jnp.zeros((seg_rows[li], lane), jnp.float32).at[:in_d, :out_d].set(w)
        w_blocks.append(wp.astype(jnp.bfloat16))
        bh_rows.append(jnp.zeros((lane,), jnp.float32).at[:out_d].set(b))

    w_last = jnp.asarray(params[2 * n_hidden], jnp.float32)             # (hidden_last, act)
    b_last = jnp.asarray(params[2 * n_hidden + 1], jnp.float32).reshape(-1)
    wlt = jnp.zeros((act_sub, lane), jnp.float32)
    wlt = wlt.at[:action_dim, :dims[n_hidden]].set(w_last.T)
    w_blocks.append(wlt.astype(jnp.bfloat16))

    w_packed = jnp.concatenate(w_blocks, axis=0)                        # bf16 (sum(seg), lane)
    b_hidden = jnp.zeros((_round_up(n_hidden, 8), lane), jnp.float32)   # 8-sublane padded
    for li in range(n_hidden):
        b_hidden = b_hidden.at[li, :].set(bh_rows[li])
    b_lastT = jnp.zeros((out_rows, 1), jnp.float32).at[:action_dim, 0].set(b_last)

    meta = dict(state_dim=state_dim, action_dim=action_dim, sp=sp, lane=lane,
                seg_rows=seg_rows, n_hidden=n_hidden, out_rows=out_rows,
                hidden_layers=hidden_layers)
    return w_packed, b_hidden, b_lastT, meta


def qnetwork_forward(x, packed):
    """x: (B, state_dim) float.  Returns (B, action_dim) fp32 (PyTorch forward semantics)."""
    w_packed, b_hidden, b_lastT, meta = packed
    sp, lane = meta["sp"], meta["lane"]
    seg_rows, n_hidden, out_rows = meta["seg_rows"], meta["n_hidden"], meta["out_rows"]
    state_dim, action_dim = meta["state_dim"], meta["action_dim"]
    dims = (state_dim,) + meta["hidden_layers"] + (action_dim,)

    B = x.shape[0]

    # Pass x straight through when no feature padding is needed (kernel casts to bf16).
    # Only the feature axis is ever padded; the batch axis stays ragged (Pallas handles the
    # partial last tile: garbage rows never mix across rows and OOB output lanes are dropped).
    if state_dim == sp:
        xin = x
    else:
        xin = jnp.zeros((B, sp), jnp.bfloat16).at[:, :state_dim].set(x.astype(jnp.bfloat16))

    # Batch tile: multiple of 128 (it becomes the OUTPUT lane axis), capped at 2048 rows,
    # and >= 2 grid steps whenever B > 128 so v7x can split the batch across its 2 TCs.
    if B <= 128:
        tm = B
    else:
        n_steps = max(2, pl.cdiv(B, 2048))
        tm = min(2048, _round_up(pl.cdiv(B, n_steps), 128))
    grid = (pl.cdiv(B, tm),)

    flops = 2 * B * sum(dims[i] * dims[i + 1] for i in range(len(dims) - 1))
    bytes_accessed = (xin.size * xin.dtype.itemsize + w_packed.size * 2
                      + b_hidden.size * 4 + b_lastT.size * 4 + out_rows * B * 4)

    kernel = _make_mlp_kernel(seg_rows, n_hidden, out_rows)
    # Weight/bias BlockSpecs have constant (0,0) index maps, so the pipeline keeps them
    # VMEM-resident and does not re-fetch per grid step (pl.Buffered(1) not needed).
    out_t = pl.pallas_call(
        kernel,
        out_shape=jax.ShapeDtypeStruct((out_rows, B), jnp.float32),   # transposed narrow slab
        grid=grid,
        in_specs=[
            pl.BlockSpec((tm, sp), lambda i: (i, 0)),           # stream batch tiles (ragged ok)
            pl.BlockSpec(w_packed.shape, lambda i: (0, 0)),     # weights stay VMEM-resident
            pl.BlockSpec(b_hidden.shape, lambda i: (0, 0)),     # hidden biases VMEM-resident
            pl.BlockSpec(b_lastT.shape, lambda i: (0, 0)),      # final bias column (out_rows,1)
        ],
        out_specs=pl.BlockSpec((out_rows, tm), lambda i: (0, i)),
        # Kept as "parallel" for portability; on v7x verify both TCs are active in the trace
        # and consider pltpu.CORE_PARALLEL for this axis if they are not.
        compiler_params=pltpu.CompilerParams(dimension_semantics=("parallel",)),
        cost_estimate=pl.CostEstimate(flops=flops, transcendentals=0,
                                      bytes_accessed=bytes_accessed),
    )(xin, w_packed, b_hidden, b_lastT)

    return out_t[:action_dim, :].T                              # (B, action_dim)


def init_params(key, state_dim, action_dim, hidden_layers=(64, 64)):
    """PyTorch nn.Linear-style init (uniform +/- 1/sqrt(fan_in)); weights stored (in, out)."""
    dims = (state_dim,) + tuple(hidden_layers) + (action_dim,)
    params = []
    for i in range(len(dims) - 1):
        fan_in, fan_out = dims[i], dims[i + 1]
        key, kw, kb = jax.random.split(key, 3)
        bound = 1.0 / (fan_in ** 0.5)
        params.append(jax.random.uniform(kw, (fan_in, fan_out), jnp.float32, -bound, bound))
        params.append(jax.random.uniform(kb, (1, fan_out), jnp.float32, -bound, bound))
    return tuple(params)


def reference_forward(x, params):
    """Pure-JAX reference (depth-generic) applying the same bf16 quantization the kernel uses
    (bf16 matmul inputs, fp32 accumulation / bias add / ReLU)."""
    bf, f32 = jnp.bfloat16, jnp.float32
    q = lambda a: a.astype(bf).astype(f32)
    n_layers = len(params) // 2
    h = q(jnp.asarray(x, f32))
    for li in range(n_layers):
        w = params[2 * li]
        b = jnp.asarray(params[2 * li + 1], f32).reshape(1, -1)
        h = jnp.dot(h, q(w), preferred_element_type=f32) + b
        if li < n_layers - 1:
            h = q(jnp.maximum(h, 0.0))
    return h


if __name__ == "__main__":
    key = jax.random.PRNGKey(0)
    batch, state_dim, action_dim = 8, 16, 4
    hidden_layers = (64, 64)

    key, kx = jax.random.split(key)
    x = jax.random.normal(kx, (batch, state_dim), jnp.float32)
    params = init_params(key, state_dim, action_dim, hidden_layers)

    packed = pack_params(params, state_dim, hidden_layers, action_dim)
    out = jax.block_until_ready(qnetwork_forward(x, packed))

    ref = reference_forward(x, params)
    assert out.shape == (batch, action_dim)
    assert jnp.allclose(out, ref, atol=1e-4, rtol=1e-4), float(jnp.max(jnp.abs(out - ref)))

    print("KERNEL_OK")
</pallas_src>

<mosaic_0001>
module attributes {stable_mosaic.version = 11 : i64} {
  func.func @kernel(%arg0: i32, %arg1: memref<8x16xf32, #tpu.memory_space<vmem>>, %arg2: memref<160x128xbf16, #tpu.memory_space<vmem>>, %arg3: memref<8x128xf32, #tpu.memory_space<vmem>>, %arg4: memref<8x1xf32, #tpu.memory_space<vmem>>, %arg5: memref<8x8xf32, #tpu.memory_space<vmem>>) attributes {dimension_semantics = [#tpu.dimension_semantics<parallel>], iteration_bounds = array<i64: 1>, scalar_prefetch = 0 : i64, scratch_operands = 0 : i64, tpu.core_type = #tpu.core_type<tc>, window_params = [{transform_indices = @transform_0, window_bounds = array<i64: 8, 16>}, {pipeline_mode = #tpu.pipeline_mode<synchronous>, transform_indices = @transform_1, window_bounds = array<i64: 160, 128>}, {pipeline_mode = #tpu.pipeline_mode<synchronous>, transform_indices = @transform_2, window_bounds = array<i64: 8, 128>}, {pipeline_mode = #tpu.pipeline_mode<synchronous>, transform_indices = @transform_3, window_bounds = array<i64: 8, 1>}, {transform_indices = @transform_4, window_bounds = array<i64: 8, 8>}]} {
    %c0 = arith.constant 0 : index
    %c0_0 = arith.constant 0 : index
    %0 = vector.load %arg1[%c0, %c0_0] : memref<8x16xf32, #tpu.memory_space<vmem>>, vector<8x16xf32>
    %1 = arith.truncf %0 : vector<8x16xf32> to vector<8x16xbf16>
    %c0_1 = arith.constant 0 : index
    %c0_2 = arith.constant 0 : index
    %2 = vector.load %arg2[%c0_1, %c0_2] : memref<160x128xbf16, #tpu.memory_space<vmem>>, vector<16x128xbf16>
    %cst = arith.constant dense<0.000000e+00> : vector<8x128xf32>
    %3 = tpu.matmul %1, %2, %cst {dimension_numbers = #tpu.dot_dimension_numbers<[1], [0], [0], [1], [0, 0, 1, 1], [], []>} : vector<8x16xbf16>, vector<16x128xbf16>, vector<8x128xf32> -> vector<8x128xf32>
    %c0_3 = arith.constant 0 : index
    %c0_4 = arith.constant 0 : index
    %4 = vector.load %arg3[%c0_3, %c0_4] : memref<8x128xf32, #tpu.memory_space<vmem>>, vector<1x128xf32>
    %5 = vector.broadcast %4 : vector<1x128xf32> to vector<8x128xf32>
    %6 = arith.addf %3, %5 : vector<8x128xf32>
    %cst_5 = arith.constant 0.000000e+00 : f32
    %7 = vector.broadcast %cst_5 : f32 to vector<8x128xf32>
    %8 = arith.maximumf %6, %7 : vector<8x128xf32>
    %9 = arith.truncf %8 : vector<8x128xf32> to vector<8x128xbf16>
    %c16 = arith.constant 16 : index
    %c0_6 = arith.constant 0 : index
    %10 = vector.load %arg2[%c16, %c0_6] : memref<160x128xbf16, #tpu.memory_space<vmem>>, vector<128x128xbf16>
    %cst_7 = arith.constant dense<0.000000e+00> : vector<8x128xf32>
    %11 = tpu.matmul %9, %10, %cst_7 {dimension_numbers = #tpu.dot_dimension_numbers<[1], [0], [0], [1], [0, 0, 1, 1], [], []>} : vector<8x128xbf16>, vector<128x128xbf16>, vector<8x128xf32> -> vector<8x128xf32>
    %c1 = arith.constant 1 : index
    %c0_8 = arith.constant 0 : index
    %12 = vector.load %arg3[%c1, %c0_8] : memref<8x128xf32, #tpu.memory_space<vmem>>, vector<1x128xf32>
    %13 = vector.broadcast %12 : vector<1x128xf32> to vector<8x128xf32>
    %14 = arith.addf %11, %13 : vector<8x128xf32>
    %cst_9 = arith.constant 0.000000e+00 : f32
    %15 = vector.broadcast %cst_9 : f32 to vector<8x128xf32>
    %16 = arith.maximumf %14, %15 : vector<8x128xf32>
    %17 = arith.truncf %16 : vector<8x128xf32> to vector<8x128xbf16>
    %c144 = arith.constant 144 : index
    %c0_10 = arith.constant 0 : index
    %18 = vector.load %arg2[%c144, %c0_10] : memref<160x128xbf16, #tpu.memory_space<vmem>>, vector<16x128xbf16>
    %cst_11 = arith.constant dense<0.000000e+00> : vector<16x8xf32>
    %19 = tpu.matmul %18, %17, %cst_11 {dimension_numbers = #tpu.dot_dimension_numbers<[1], [1], [0], [0], [0, 0, 1, 0], [], []>} : vector<16x128xbf16>, vector<8x128xbf16>, vector<16x8xf32> -> vector<16x8xf32>
    %20 = vector.extract_strided_slice %19 {offsets = [0, 0], sizes = [8, 8], strides = [1, 1]} : vector<16x8xf32> to vector<8x8xf32>
    %c0_12 = arith.constant 0 : index
    %c0_13 = arith.constant 0 : index
    %21 = vector.load %arg4[%c0_12, %c0_13] : memref<8x1xf32, #tpu.memory_space<vmem>>, vector<8x1xf32>
    %22 = vector.broadcast %21 : vector<8x1xf32> to vector<8x8xf32>
    %23 = arith.addf %20, %22 : vector<8x8xf32>
    %c0_14 = arith.constant 0 : index
    %c0_15 = arith.constant 0 : index
    %24 = vector.load %arg5[%c0_14, %c0_15] : memref<8x8xf32, #tpu.memory_space<vmem>>, vector<8x8xf32>
    tpu.vector_store %arg5[%c0_14, %c0_15], %23 {strides = array<i32>} : memref<8x8xf32, #tpu.memory_space<vmem>>, vector<8x8xf32>,
    return
  }
  func.func @transform_0(%arg0: i32) -> (i32, i32) {
    %c0_i32 = arith.constant 0 : i32
    %c0_i32_0 = arith.constant 0 : i32
    return %arg0, %c0_i32 : i32, i32
  }
  func.func @transform_1(%arg0: i32) -> (i32, i32) {
    %c0_i32 = arith.constant 0 : i32
    %c0_i32_0 = arith.constant 0 : i32
    %c0_i32_1 = arith.constant 0 : i32
    return %c0_i32, %c0_i32_0 : i32, i32
  }
  func.func @transform_2(%arg0: i32) -> (i32, i32) {
    %c0_i32 = arith.constant 0 : i32
    %c0_i32_0 = arith.constant 0 : i32
    %c0_i32_1 = arith.constant 0 : i32
    return %c0_i32, %c0_i32_0 : i32, i32
  }
  func.func @transform_3(%arg0: i32) -> (i32, i32) {
    %c0_i32 = arith.constant 0 : i32
    %c0_i32_0 = arith.constant 0 : i32
    %c0_i32_1 = arith.constant 0 : i32
    return %c0_i32, %c0_i32_0 : i32, i32
  }
  func.func @transform_4(%arg0: i32) -> (i32, i32) {
    %c0_i32 = arith.constant 0 : i32
    %c0_i32_0 = arith.constant 0 : i32
    return %c0_i32, %arg0 : i32, i32
  }
}

</mosaic_0001>

<llo_original>
// kernel: tpu_custom_call.1
$region0: #{tpu_custom_call.1}
  #allocation0 [shape = 'u32[]', space=smem, size = 0x4, offset = 0x4, fixed_abs, tag = 'smem constant byte address 0x4 - core index']
  #allocation1 [shape = 'u32[144,128]{1,0:T(1,128)}', space=vmem, size = 0x12000, scoped, tag = 'internal scratch']
  %s0 = inlined_call_operand.vmem [shape: f32[8,16], index: 0, kind: input, shape index: {}]
  %s1 = inlined_call_operand.hbm [shape: bf16[160,128], index: 1, kind: input, shape index: {}]
  %s2 = inlined_call_operand.hbm [shape: f32[8,128], index: 2, kind: input, shape index: {}]
  %s3 = inlined_call_operand.vmem [shape: f32[8,1], index: 3, kind: input, shape index: {}]
  %s4 = inlined_call_operand.hbm [shape: f32[8,8], index: 4, kind: output, shape index: {}]
  %s5 = sld [smem:[#allocation0]]
  $region34: #{tpu_custom_call.1} parent=0
    _
  %s7 = ssub.s32 1, %s5
  %s8 = scalar_select 0, %s7, %s5
  $region1: #{tpu_custom_call.1} parent=0
    #allocation2 [shape = 'u8[40960]{0}', space=vmem, size = 0xa000, scoped, tag = 'input window, operand 1, single buffered']
    #allocation3 [shape = 's32[1]{0}', space=sflag, size = 0x4, scoped, tag = 'scoped memory for tpu_custom_call.1']
    #allocation4 [shape = 's32[1]{0}', space=sflag, size = 0x4, scoped, tag = 'scoped memory for tpu_custom_call.1']
    #allocation5 [shape = 'u8[4096]{0}', space=vmem, size = 0x1000, scoped, tag = 'input window, operand 2, single buffered']
    #allocation6 [shape = 's32[1]{0}', space=sflag, size = 0x4, scoped, tag = 'scoped memory for tpu_custom_call.1']
    #allocation7 [shape = 'u8[4096]{0}', space=vmem, size = 0x1000, scoped, tag = 'output window, operand 0, single buffered']
    %9 = vsyncpa [#allocation3], 0
    %10 = vsyncpa [#allocation6], 0
    %11 = vsyncpa [#allocation4], 0
    // Predicated region
    $region2: #{tpu_custom_call.1} parent=1 // pred_check
      _
    $region3: #{tpu_custom_call.1} parent=1 // pred_check_branch
      %13 = sbr.rel (0) target = $region5
    $region4: #{tpu_custom_call.1} parent=1 // pred_region
      _
    $region5: #{tpu_custom_call.1} parent=1 // pred_fallthru
      _
    // Predicated region
    $region6: #{tpu_custom_call.1} parent=1 // pred_check
      _
    $region7: #{tpu_custom_call.1} parent=1 // pred_check_branch
      %15 = sbr.rel (0) target = $region9
    $region8: #{tpu_custom_call.1} parent=1 // pred_region
      %s17 = ssub.s32 1280, 1280
      %18 = vsyncadd [#allocation3], %s17
      %s19 = sshll.u32 [#allocation2], 4
      %s20 = int_to_ptr.vmem [resolvable:$true] %s19
      %25 = dma.hbm_to_vmem [thread:$0]  %s1, 1280, %s20, [#allocation3], 64, 64, 4
    $region9: #{tpu_custom_call.1} parent=1 // pred_fallthru
      _
    // Predicated region
    $region10: #{tpu_custom_call.1} parent=1 // pred_check
      _
    $region11: #{tpu_custom_call.1} parent=1 // pred_check_branch
      %27 = sbr.rel (0) target = $region13
    $region12: #{tpu_custom_call.1} parent=1 // pred_region
      %s29 = ssub.s32 128, 128
      %30 = vsyncadd [#allocation6], %s29
      %s32 = sshll.u32 [#allocation5], 4
      %s33 = int_to_ptr.vmem [resolvable:$true] %s32
      %35 = dma.hbm_to_vmem [thread:$0]  %s2, 128, %s33, [#allocation6]
    $region13: #{tpu_custom_call.1} parent=1 // pred_fallthru
      _
    // Predicated region
    $region14: #{tpu_custom_call.1} parent=1 // pred_check
      _
    $region15: #{tpu_custom_call.1} parent=1 // pred_check_branch
      %37 = sbr.rel (0) target = $region17
    $region16: #{tpu_custom_call.1} parent=1 // pred_region
      _
    $region17: #{tpu_custom_call.1} parent=1 // pred_fallthru
      _
    // Predicated region
    $region18: #{tpu_custom_call.1} parent=1 // pred_check
      _
    $region19: #{tpu_custom_call.1} parent=1 // pred_check_branch
      %39 = sbr.rel (0) target = $region21
    $region20: #{tpu_custom_call.1} parent=1 // pred_region
      %40 = dma.done [#allocation3], 1280
    $region21: #{tpu_custom_call.1} parent=1 // pred_fallthru
      _
    // Predicated region
    $region22: #{tpu_custom_call.1} parent=1 // pred_check
      _
    $region23: #{tpu_custom_call.1} parent=1 // pred_check_branch
      %42 = sbr.rel (0) target = $region25
    $region24: #{tpu_custom_call.1} parent=1 // pred_region
      %43 = dma.done [#allocation6], 128
    $region25: #{tpu_custom_call.1} parent=1 // pred_fallthru
      _
    %v45 = vld [vmem:[%s0] sm:$0xff]
    %v46 = vpack.c.bf16 %v45, %v45
    %v47 = vld [vmem:[#allocation2] sm:$0xf]
    %v48 = vld [vmem:[#allocation2 + $0x4] sm:$0xf]
    %v49 = vld [vmem:[#allocation5] sm:$0x1]
    %v50 = vlaneseq
    %v51 = vshrl.u32 %v50, 7
    %v52 = vsub.s32 0, %v51
    %v53 = vrot.slane %v49, %v52
    %v56 = vunpack.c.l.b16 %v47
    %v57 = vunpack.c.l.b16 %v48
    %v58 = vpack.c.b16 %v57, %v56
    %vm60 = vcmask 130048
    %v62 = vsel %vm60, %v46, 0
    %64 = vmatprep.subr.bf16.mxu0 0
    %65 = vmatpush1.bf16.msra.mxu0 0
    %66 = vmatprep.subr.bf16.mxu0 0
    %67 = vmatpush1.bf16.msra.mxu0 0
    %68 = vmatprep.subr.bf16.mxu0 0
    %69 = vmatpush1.bf16.msra.mxu0 0
    %70 = vmatprep.subr.bf16.mxu0 0
    %71 = vmatpush1.bf16.msra.mxu0 0
    %72 = vmatprep.subr.bf16.mxu0 0
    %73 = vmatpush1.bf16.msra.mxu0 0
    %74 = vmatprep.subr.bf16.mxu0 0
    %75 = vmatpush1.bf16.msra.mxu0 0
    %76 = vmatprep.subr.bf16.mxu0 0
    %77 = vmatpush1.bf16.msra.mxu0 0
    %78 = vmatprep.subr.bf16.mxu0 0
    %79 = vmatpush1.bf16.msra.mxu0 %v58
    %80 = vmatprep.subr.bf16.mxu0 0
    %81 = vmatpush2.bf16.msra.mxu0 0
    %82 = vmatprep.subr.bf16.mxu0 0
    %83 = vmatpush2.bf16.msra.mxu0 0
    %84 = vmatprep.subr.bf16.mxu0 0
    %85 = vmatpush2.bf16.msra.mxu0 0
    %86 = vmatprep.subr.bf16.mxu0 0
    %87 = vmatpush2.bf16.msra.mxu0 0
    %88 = vmatprep.subr.bf16.mxu0 0
    %89 = vmatpush2.bf16.msra.mxu0 0
    %90 = vmatprep.subr.bf16.mxu0 0
    %91 = vmatpush2.bf16.msra.mxu0 0
    %92 = vmatprep.subr.bf16.mxu0 0
    %93 = vmatpush2.bf16.msra.mxu0 0
    %94 = vmatprep.subr.bf16.mxu0 0
    %95 = vmatpush2.bf16.msra.mxu0 0
    %96 = vmatprep.mubr.bf16.mxu0 0
    %97 = vmatmul.mubr.bf16.gmra.mxu0 %v62
    %v98 = vpop.f32.mrf.mxu0
    %v99 = vadd.f32 %v53, %v98
    %v100 = vpop.f32.mrf.mxu0
    %v101 = vpop.f32.mrf.mxu0
    %v102 = vpop.f32.mrf.mxu0
    %103 = vdwg.mxu0
    %v104 = vmax.f32 %v99, 0.0
    %v105 = vpack.c.bf16 %v104, %v104
    %v106 = vld [vmem:[#allocation2 + $0x8] sm:$0xf]
    %v107 = vld [vmem:[#allocation2 + $0xc] sm:$0xf]
    %v108 = vld [vmem:[#allocation2 + $0x10] sm:$0xf]
    %v109 = vld [vmem:[#allocation2 + $0x14] sm:$0xf]
    %v110 = vld [vmem:[#allocation2 + $0x18] sm:$0xf]
    %v111 = vld [vmem:[#allocation2 + $0x1c] sm:$0xf]
    %v112 = vld [vmem:[#allocation2 + $0x20] sm:$0xf]
    %v113 = vld [vmem:[#allocation2 + $0x24] sm:$0xf]
    %v114 = vld [vmem:[#allocation2 + $0x28] sm:$0xf]
    %v115 = vld [vmem:[#allocation2 + $0x2c] sm:$0xf]
    %v116 = vld [vmem:[#allocation2 + $0x30] sm:$0xf]
    %v117 = vld [vmem:[#allocation2 + $0x34] sm:$0xf]
    %v118 = vld [vmem:[#allocation2 + $0x38] sm:$0xf]
    %v119 = vld [vmem:[#allocation2 + $0x3c] sm:$0xf]
    %v120 = vld [vmem:[#allocation2 + $0x40] sm:$0xf]
    %v121 = vld [vmem:[#allocation2 + $0x44] sm:$0xf]
    %v122 = vld [vmem:[#allocation5 + $0x1] sm:$0x1]
    %v123 = vlaneseq
    %v124 = vshrl.u32 %v123, 7
    %v125 = vsub.s32 0, %v124
    %v126 = vrot.slane %v122, %v125
    %v143 = vunpack.c.l.b16 %v106
    %v144 = vunpack.c.l.b16 %v107
    %v145 = vunpack.c.l.b16 %v108
    %v146 = vunpack.c.l.b16 %v109
    %v147 = vunpack.c.l.b16 %v110
    %v148 = vunpack.c.l.b16 %v111
    %v149 = vunpack.c.l.b16 %v112
    %v150 = vunpack.c.l.b16 %v113
    %v151 = vunpack.c.l.b16 %v114
    %v152 = vunpack.c.l.b16 %v115
    %v153 = vunpack.c.l.b16 %v116
    %v154 = vunpack.c.l.b16 %v117
    %v155 = vunpack.c.l.b16 %v118
    %v156 = vunpack.c.l.b16 %v119
    %v157 = vunpack.c.l.b16 %v120
    %v158 = vunpack.c.l.b16 %v121
    %v159 = vpack.c.b16 %v144, %v143
    %v160 = vpack.c.b16 %v146, %v145
    %v161 = vpack.c.b16 %v148, %v147
    %v162 = vpack.c.b16 %v150, %v149
    %v163 = vpack.c.b16 %v152, %v151
    %v164 = vpack.c.b16 %v154, %v153
    %v165 = vpack.c.b16 %v156, %v155
    %v166 = vpack.c.b16 %v158, %v157
    %175 = vmatprep.subr.bf16.mxu0 0
    %176 = vmatpush1.bf16.msra.mxu0 %v166
    %177 = vmatprep.subr.bf16.mxu0 0
    %178 = vmatpush1.bf16.msra.mxu0 %v165
    %179 = vmatprep.subr.bf16.mxu0 0
    %180 = vmatpush1.bf16.msra.mxu0 %v164
    %181 = vmatprep.subr.bf16.mxu0 0
    %182 = vmatpush1.bf16.msra.mxu0 %v163
    %183 = vmatprep.subr.bf16.mxu0 0
    %184 = vmatpush1.bf16.msra.mxu0 %v162
    %185 = vmatprep.subr.bf16.mxu0 0
    %186 = vmatpush1.bf16.msra.mxu0 %v161
    %187 = vmatprep.subr.bf16.mxu0 0
    %188 = vmatpush1.bf16.msra.mxu0 %v160
    %189 = vmatprep.subr.bf16.mxu0 0
    %190 = vmatpush1.bf16.msra.mxu0 %v159
    %191 = vmatprep.subr.bf16.mxu0 0
    %192 = vmatpush2.bf16.msra.mxu0 0
    %193 = vmatprep.subr.bf16.mxu0 0
    %194 = vmatpush2.bf16.msra.mxu0 0
    %195 = vmatprep.subr.bf16.mxu0 0
    %196 = vmatpush2.bf16.msra.mxu0 0
    %197 = vmatprep.subr.bf16.mxu0 0
    %198 = vmatpush2.bf16.msra.mxu0 0
    %199 = vmatprep.subr.bf16.mxu0 0
    %200 = vmatpush2.bf16.msra.mxu0 0
    %201 = vmatprep.subr.bf16.mxu0 0
    %202 = vmatpush2.bf16.msra.mxu0 0
    %203 = vmatprep.subr.bf16.mxu0 0
    %204 = vmatpush2.bf16.msra.mxu0 0
    %205 = vmatprep.subr.bf16.mxu0 0
    %206 = vmatpush2.bf16.msra.mxu0 0
    %207 = vmatprep.mubr.bf16.mxu0 0
    %208 = vmatmul.mubr.bf16.gmra.mxu0 %v105
    %v209 = vpop.f32.mrf.mxu0
    %v210 = vadd.f32 %v126, %v209
    %v211 = vpop.f32.mrf.mxu0
    %v212 = vpop.f32.mrf.mxu0
    %v213 = vpop.f32.mrf.mxu0
    %214 = vdwg.mxu0
    %v215 = vmax.f32 %v210, 0.0
    %v216 = vpack.c.bf16 %v215, %v215
    %v217 = vld [vmem:[#allocation2 + $0x48] sm:$0xf]
    %v218 = vld [vmem:[#allocation2 + $0x4c] sm:$0xf]
    %v221 = vunpack.c.l.b16 %v217
    %v222 = vunpack.c.l.b16 %v218
    %v223 = vpack.c.b16 %v222, %v221
    %225 = vmatprep.subr.bf16.mxu0 0
    %226 = vmatpush1.bf16.xpose.msra.mxu0 0
    %227 = vmatprep.subr.bf16.mxu0 0
    %228 = vmatpush1.bf16.xpose.msra.mxu0 0
    %229 = vmatprep.subr.bf16.mxu0 0
    %230 = vmatpush1.bf16.xpose.msra.mxu0 0
    %231 = vmatprep.subr.bf16.mxu0 0
    %232 = vmatpush1.bf16.xpose.msra.mxu0 0
    %233 = vmatprep.subr.bf16.mxu0 0
    %234 = vmatpush1.bf16.xpose.msra.mxu0 0
    %235 = vmatprep.subr.bf16.mxu0 0
    %236 = vmatpush1.bf16.xpose.msra.mxu0 0
    %237 = vmatprep.subr.bf16.mxu0 0
    %238 = vmatpush1.bf16.xpose.msra.mxu0 0
    %239 = vmatprep.subr.bf16.mxu0 0
    %240 = vmatpush1.bf16.xpose.msra.mxu0 %v216
    %241 = vmatprep.subr.bf16.mxu0 0
    %242 = vmatpush2.bf16.xpose.msra.mxu0 0
    %243 = vmatprep.subr.bf16.mxu0 0
    %244 = vmatpush2.bf16.xpose.msra.mxu0 0
    %245 = vmatprep.subr.bf16.mxu0 0
    %246 = vmatpush2.bf16.xpose.msra.mxu0 0
    %247 = vmatprep.subr.bf16.mxu0 0
    %248 = vmatpush2.bf16.xpose.msra.mxu0 0
    %249 = vmatprep.subr.bf16.mxu0 0
    %250 = vmatpush2.bf16.xpose.msra.mxu0 0
    %251 = vmatprep.subr.bf16.mxu0 0
    %252 = vmatpush2.bf16.xpose.msra.mxu0 0
    %253 = vmatprep.subr.bf16.mxu0 0
    %254 = vmatpush2.bf16.xpose.msra.mxu0 0
    %255 = vmatprep.subr.bf16.mxu0 0
    %256 = vmatpush2.bf16.xpose.msra.mxu0 0
    %257 = vmatprep.mubr.bf16.mxu0 0
    %258 = vmatmul.mubr.bf16.gmra.mxu0 %v223
    %v259 = vpop.f32.mrf.mxu0
    %v260 = vadd.f32 0.0, %v259
    %v261 = vpop.f32.mrf.mxu0
    %v262 = vpop.f32.mrf.mxu0
    %v263 = vpop.f32.mrf.mxu0
    %264 = vdwg.mxu0
    %v265 = vld [vmem:[%s3] sm:$0xff]
    %267 = vset.pattern.permute.xlu0 0
    %268 = vperm.xlu0 %267, %v265
    %v269 = vpop.permute.xlu0 %268
    %v271 = vadd.f32 %v260, %v269
    %vm272 = vcmask 64512
    %273 = vst.msk [vmem:[#allocation7] sm:$0xff] %vm272, %v271
    // Predicated region
    $region26: #{tpu_custom_call.1} parent=1 // pred_check
      _
    $region27: #{tpu_custom_call.1} parent=1 // pred_check_branch
      %275 = sbr.rel (0) target = $region29
    $region28: #{tpu_custom_call.1} parent=1 // pred_region
      %s277 = ssub.s32 128, 128
      %278 = vsyncadd [#allocation4], %s277
      %s280 = sshll.u32 [#allocation7], 4
      %s281 = int_to_ptr.vmem [resolvable:$true] %s280
      %283 = dma.vmem_to_hbm [thread:$0]  %s281, 128, %s4, [#allocation4]
    $region29: #{tpu_custom_call.1} parent=1 // pred_fallthru
      _
    // Predicated region
    $region30: #{tpu_custom_call.1} parent=1 // pred_check
      _
    $region31: #{tpu_custom_call.1} parent=1 // pred_check_branch
      %285 = sbr.rel (0) target = $region33
    $region32: #{tpu_custom_call.1} parent=1 // pred_region
      %286 = dma.done [#allocation4], 128
    $region33: #{tpu_custom_call.1} parent=1 // pred_fallthru
      _
    %287 = vsyncpa [#allocation3], 1
    %288 = vsyncpa [#allocation6], 1
    %289 = vsyncpa [#allocation4], 1

</llo_original>
